<compile_context>
chip_gen: v7x
topology: tpu7x:2x2x1
jax: 0.10.0
libtpu: 0.0.40
codegen_flags: <defaults>
</compile_context>

<pallas_src>
import jax
import jax.numpy as jnp
from jax import lax
from jax.experimental import pallas as pl
from jax.experimental.pallas import tpu as pltpu


def _round_up(x, m):
    return ((x + m - 1) // m) * m


def _vmem_capacity_bytes():
    """Physical VMEM of the local TPU generation (fallback: 64 MiB = v7x/TC)."""
    try:
        cap = getattr(pltpu.get_tpu_info(), "vmem_capacity_bytes", None)
        if cap:
            return int(cap)
    except Exception:
        pass
    return 64 << 20


def _plan(M, K, itemsize):
    """Choose K tile, split count and VMEM limit for the partial-Gram kernel."""
    cap = _vmem_capacity_bytes()
    # Leave 16 MiB headroom below physical VMEM for compiler-internal scratch.
    # v5e/v6e (128 MiB) -> 112 MiB usable; v7x (64 MiB) -> 48 MiB usable.
    limit = max(32 << 20, cap - (16 << 20))

    gram_bytes = 2 * M * M * 4                      # double-buffered f32 output block
    feat_budget = max(1 << 20, limit - gram_bytes - (6 << 20))
    # Conservative live-bytes per feature column: double-buffered input tile,
    # a loaded/masked copy, plus int32 iota/mask temporaries for the tail mask.
    per_col = M * (4 * itemsize + 12)
    max_tk = max(128, (feat_budget // per_col) // 128 * 128)

    k128 = _round_up(K, 128)
    tk = int(min(max_tk, 1 << 17, k128))            # multiple of 128

    nkt = pl.cdiv(K, tk)                            # number of real K tiles
    if nkt == 1 and k128 >= 256:
        # Split even a single-tile K in two so the "parallel" axis can engage
        # v7x's second TensorCore (harmless serialization on v5e/v6e).
        tk = _round_up(pl.cdiv(K, 2), 128)
        nkt = pl.cdiv(K, tk)

    nc = 2 if nkt >= 2 else 1                       # split-K across <=2 cores
    kk = pl.cdiv(nkt, nc)                           # K tiles per split
    needs_mask = (nc * kk * tk) != K                # tail / overhang tiles exist
    return tk, nkt, nc, kk, needs_mask, int(limit)


def _prep_features(x_nchw):
    a, b, c, d = x_nchw.shape
    M, K = a * b, c * d
    feats = x_nchw.reshape(M, K)
    # Keep narrow float dtypes narrow (halves the dominant HBM stream); widen
    # anything exotic to f32 to preserve reference numerics.
    if feats.dtype not in (jnp.dtype(jnp.bfloat16),
                           jnp.dtype(jnp.float16),
                           jnp.dtype(jnp.float32)):
        feats = feats.astype(jnp.float32)
    inv_denom = 1.0 / float(a * b * c * d)
    return feats, M, K, inv_denom


def _partial_gram_kernel(K, tk, kk, inv_denom, needs_mask):
    """One split's partial Gram: G_c = (sum of F_tile F_tile^T over this split) * inv_denom."""

    def kernel(f_ref, g_ref):
        k = pl.program_id(1)

        @pl.when(k == 0)
        def _():
            g_ref[...] = jnp.zeros_like(g_ref)

        f = f_ref[...]                                        # (M, tk), native dtype
        if needs_mask:
            # Zero columns past K (partial tail tile, or a fully-overhanging
            # tile whose block index was clamped in the index_map).  Only
            # compiled when the tiling does not divide K exactly.
            tile = pl.program_id(0) * kk + k                  # global K-tile index
            valid = K - tile * tk                             # <= 0 for overhang tiles
            col = lax.broadcasted_iota(jnp.int32, f.shape, 1)
            f = jnp.where(col < valid, f, 0)

        # Contract both operands over their K axis (RHS consumed transposed,
        # no explicit transpose stream); accumulate in f32 on the MXU.
        g_ref[...] += lax.dot_general(
            f, f,
            dimension_numbers=(((1,), (1,)), ((), ())),
            preferred_element_type=jnp.float32,
        )

        @pl.when(k == kk - 1)
        def _():
            g_ref[...] = g_ref[...] * inv_denom

    return kernel


def _gram_partials(feats, M, K, inv_denom):
    """Returns (nc, M, M) f32 partial Grams, already scaled by inv_denom."""
    itemsize = jnp.dtype(feats.dtype).itemsize
    tk, nkt, nc, kk, needs_mask, vmem_limit = _plan(M, K, itemsize)

    if nc * kk > nkt:
        # Exactly one overhang tile exists (odd tile count split in two):
        # clamp its block index in range; the kernel masks it to zero.
        f_index_map = lambda c, k: (0, jnp.minimum(c * kk + k, nkt - 1))
    else:
        f_index_map = lambda c, k: (0, c * kk + k)

    return pl.pallas_call(
        _partial_gram_kernel(K, tk, kk, inv_denom, needs_mask),
        out_shape=jax.ShapeDtypeStruct((nc, M, M), jnp.float32),
        grid_spec=pltpu.PrefetchScalarGridSpec(
            num_scalar_prefetch=0,
            grid=(nc, kk),                                  # reduction axis last
            in_specs=[pl.BlockSpec((M, tk), f_index_map)],  # streamed features
            out_specs=pl.BlockSpec((None, M, M), lambda c, k: (c, 0, 0)),
            scratch_shapes=[],
        ),
        compiler_params=pltpu.CompilerParams(
            dimension_semantics=("parallel", "arbitrary"),
            vmem_limit_bytes=vmem_limit,
        ),
    )(feats)


def gram_matrix_pallas(x_nchw):
    """gram_matrix(x) exactly as in the PyTorch reference."""
    feats, M, K, inv_denom = _prep_features(x_nchw)
    partials = _gram_partials(feats, M, K, inv_denom)
    # O(M^2) combine of the split-K partials; negligible next to the M*K stream.
    return jnp.sum(partials, axis=0)


def style_mse_loss_pallas(x_nchw, target_gram):
    """mse_loss(gram_matrix(x), target)."""
    feats, M, K, inv_denom = _prep_features(x_nchw)
    partials = _gram_partials(feats, M, K, inv_denom)
    G = jnp.sum(partials, axis=0)
    # TODO(synk): fuse this O(M^2) combine + MSE epilogue into a tiny second
    # Pallas call if it ever shows up in profiles (it will not while K >> M).
    diff = G - target_gram.astype(jnp.float32)
    return jnp.mean(diff * diff)


class StyleLossPallas:
    """Mirror of the PyTorch StyleLoss module using the Pallas kernel."""

    def __init__(self, target_feature):
        # target = gram_matrix(target_feature).detach()
        self.target = gram_matrix_pallas(target_feature)
        self.loss = None

    def __call__(self, x):
        self.loss = style_mse_loss_pallas(x, self.target)
        return x  # passthrough, exactly like the PyTorch forward


if __name__ == "__main__":
    key = jax.random.PRNGKey(0)
    k1, k2 = jax.random.split(key)

    # Small shapes consistent with the module: NCHW, a*b = 8, c*d = 256.
    a, b, c, d = 2, 4, 16, 16
    target_feature = jax.random.normal(k1, (a, b, c, d), dtype=jnp.float32)
    x = jax.random.normal(k2, (a, b, c, d), dtype=jnp.float32)

    module = StyleLossPallas(target_feature)
    out = module(x)

    jax.block_until_ready(out)
    jax.block_until_ready(module.loss)
    jax.block_until_ready(module.target)

    # Reference check in plain JAX (same math as torch gram_matrix + mse_loss).
    def gram_ref(t):
        aa, bb, cc, dd = t.shape
        f = t.reshape(aa * bb, cc * dd)
        return (f @ f.T) / (aa * bb * cc * dd)

    G_ref = gram_ref(x)
    T_ref = gram_ref(target_feature)
    loss_ref = jnp.mean((G_ref - T_ref) ** 2)

    assert out.shape == x.shape
    assert jnp.allclose(out, x)
    assert jnp.allclose(module.target, T_ref, rtol=1e-5, atol=1e-5)
    assert jnp.allclose(module.loss, loss_ref, rtol=1e-5, atol=1e-5)

    print("KERNEL_OK")
</pallas_src>

<mosaic_0001>
module attributes {stable_mosaic.version = 11 : i64} {
  func.func @kernel(%arg0: i32, %arg1: i32, %arg2: memref<8x128xf32, #tpu.memory_space<vmem>>, %arg3: memref<1x8x8xf32, #tpu.memory_space<vmem>>) attributes {dimension_semantics = [#tpu.dimension_semantics<parallel>, #tpu.dimension_semantics<arbitrary>], iteration_bounds = array<i64: 2, 1>, scalar_prefetch = 0 : i64, scratch_operands = 0 : i64, tpu.core_type = #tpu.core_type<tc>, window_params = [{transform_indices = @transform_0, window_bounds = array<i64: 8, 128>}, {transform_indices = @transform_1, window_bounds = array<i64: 1, 8, 8>}]} {
    %c0_i32 = arith.constant 0 : i32
    %0 = arith.cmpi eq, %arg1, %c0_i32 : i32
    %1 = arith.extui %0 : i1 to i32
    %c0_i32_0 = arith.constant 0 : i32
    %2 = arith.cmpi ne, %1, %c0_i32_0 : i32
    scf.if %2 {
      %cst_10 = arith.constant 0.000000e+00 : f32
      %14 = vector.broadcast %cst_10 : f32 to vector<8x8xf32>
      %c0_11 = arith.constant 0 : index
      %c0_12 = arith.constant 0 : index
      %c0_13 = arith.constant 0 : index
      %15 = vector.load %arg3[%c0_11, %c0_12, %c0_13] : memref<1x8x8xf32, #tpu.memory_space<vmem>>, vector<1x8x8xf32>
      %16 = vector.shape_cast %15 : vector<1x8x8xf32> to vector<8x8xf32>
      %17 = vector.shape_cast %14 : vector<8x8xf32> to vector<1x8x8xf32>
      tpu.vector_store %arg3[%c0_11, %c0_12, %c0_13], %17 {strides = array<i32>} : memref<1x8x8xf32, #tpu.memory_space<vmem>>, vector<1x8x8xf32>,
    } else {
    }
    %c0 = arith.constant 0 : index
    %c0_1 = arith.constant 0 : index
    %3 = vector.load %arg2[%c0, %c0_1] : memref<8x128xf32, #tpu.memory_space<vmem>>, vector<8x128xf32>
    %c0_2 = arith.constant 0 : index
    %c0_3 = arith.constant 0 : index
    %c0_4 = arith.constant 0 : index
    %4 = vector.load %arg3[%c0_2, %c0_3, %c0_4] : memref<1x8x8xf32, #tpu.memory_space<vmem>>, vector<1x8x8xf32>
    %5 = vector.shape_cast %4 : vector<1x8x8xf32> to vector<8x8xf32>
    %cst = arith.constant dense<0.000000e+00> : vector<8x8xf32>
    %6 = tpu.matmul %3, %3, %cst {dimension_numbers = #tpu.dot_dimension_numbers<[1], [1], [0], [0], [0, 0, 1, 0], [], []>} : vector<8x128xf32>, vector<8x128xf32>, vector<8x8xf32> -> vector<8x8xf32>
    %7 = arith.addf %5, %6 : vector<8x8xf32>
    %c0_5 = arith.constant 0 : index
    %c0_6 = arith.constant 0 : index
    %c0_7 = arith.constant 0 : index
    %8 = vector.load %arg3[%c0_5, %c0_6, %c0_7] : memref<1x8x8xf32, #tpu.memory_space<vmem>>, vector<1x8x8xf32>
    %9 = vector.shape_cast %8 : vector<1x8x8xf32> to vector<8x8xf32>
    %10 = vector.shape_cast %7 : vector<8x8xf32> to vector<1x8x8xf32>
    tpu.vector_store %arg3[%c0_5, %c0_6, %c0_7], %10 {strides = array<i32>} : memref<1x8x8xf32, #tpu.memory_space<vmem>>, vector<1x8x8xf32>,
    %c0_i32_8 = arith.constant 0 : i32
    %11 = arith.cmpi eq, %arg1, %c0_i32_8 : i32
    %12 = arith.extui %11 : i1 to i32
    %c0_i32_9 = arith.constant 0 : i32
    %13 = arith.cmpi ne, %12, %c0_i32_9 : i32
    scf.if %13 {
      %c0_10 = arith.constant 0 : index
      %c0_11 = arith.constant 0 : index
      %c0_12 = arith.constant 0 : index
      %14 = vector.load %arg3[%c0_10, %c0_11, %c0_12] : memref<1x8x8xf32, #tpu.memory_space<vmem>>, vector<1x8x8xf32>
      %15 = vector.shape_cast %14 : vector<1x8x8xf32> to vector<8x8xf32>
      %cst_13 = arith.constant 4.8828125E-4 : f32
      %16 = vector.broadcast %cst_13 : f32 to vector<8x8xf32>
      %17 = arith.mulf %15, %16 : vector<8x8xf32>
      %c0_14 = arith.constant 0 : index
      %c0_15 = arith.constant 0 : index
      %c0_16 = arith.constant 0 : index
      %18 = vector.load %arg3[%c0_14, %c0_15, %c0_16] : memref<1x8x8xf32, #tpu.memory_space<vmem>>, vector<1x8x8xf32>
      %19 = vector.shape_cast %18 : vector<1x8x8xf32> to vector<8x8xf32>
      %20 = vector.shape_cast %17 : vector<8x8xf32> to vector<1x8x8xf32>
      tpu.vector_store %arg3[%c0_14, %c0_15, %c0_16], %20 {strides = array<i32>} : memref<1x8x8xf32, #tpu.memory_space<vmem>>, vector<1x8x8xf32>,
    } else {
    }
    return
  }
  func.func @transform_0(%arg0: i32, %arg1: i32) -> (i32, i32) {
    %c1_i32 = arith.constant 1 : i32
    %0 = arith.muli %arg0, %c1_i32 : i32
    %1 = arith.addi %0, %arg1 : i32
    %c0_i32 = arith.constant 0 : i32
    %c0_i32_0 = arith.constant 0 : i32
    return %c0_i32, %1 : i32, i32
  }
  func.func @transform_1(%arg0: i32, %arg1: i32) -> (i32, i32, i32) {
    %c0_i32 = arith.constant 0 : i32
    %c0_i32_0 = arith.constant 0 : i32
    %c0_i32_1 = arith.constant 0 : i32
    return %arg0, %c0_i32, %c0_i32_0 : i32, i32, i32
  }
}

</mosaic_0001>

<llo_original>
// kernel: tpu_custom_call.1
$region0: #{tpu_custom_call.1}
  #allocation0 [shape = 'u32[]', space=smem, size = 0x4, offset = 0x4, fixed_abs, tag = 'smem constant byte address 0x4 - core index']
  #allocation1 [shape = 'u32[144,128]{1,0:T(1,128)}', space=vmem, size = 0x12000, scoped, tag = 'internal scratch']
  %s0 = inlined_call_operand.hbm [shape: f32[8,256], index: 0, kind: input, shape index: {}]
  %s1 = inlined_call_operand.hbm [shape: f32[2,8,8], index: 1, kind: output, shape index: {}]
  %s2 = sld [smem:[#allocation0]]
  $region49: #{tpu_custom_call.1} parent=0
    _
  %s4 = ssub.s32 1, %s2
  %s5 = scalar_select 0, %s4, %s2
  $region1: #{tpu_custom_call.1} parent=0
    #allocation2 [shape = 'u8[8192]{0}', space=vmem, size = 0x2000, scoped, tag = 'input window, operand 0']
    #allocation3 [shape = 's32[2]{0}', space=sflag, size = 0x8, scoped, tag = 'scoped memory for tpu_custom_call.1']
    #allocation4 [shape = 's32[2]{0}', space=sflag, size = 0x8, scoped, tag = 'scoped memory for tpu_custom_call.1']
    #allocation5 [shape = 'u8[8192]{0}', space=vmem, size = 0x2000, scoped, tag = 'output window, operand 0']
    %6 = vsyncpa [#allocation3], 0
    %s7 = scalar_lea.sflag [#allocation3], 1
    %8 = vsyncpa %s7, 0
    %9 = vsyncpa [#allocation4], 0
    %s10 = scalar_lea.sflag [#allocation4], 1
    %11 = vsyncpa %s10, 0
    loop: start=0, step=1, limit=4
    $region2: #{tpu_custom_call.1} parent=1 // loop_pre_header
      _
    $region3: #{tpu_custom_call.1} parent=1 // loop_header
      %s13 = sphi 0, %s17
      %p14 = scmp.ge.s32.totalorder %s13, 4
      %s20 = sphi 0, %s32
      %s21 = sphi 0, %s28
      %s22 = sphi 0, %s20
      %s23 = sphi 0, %s21
      %s24 = sphi 0, %s22
      %s25 = sphi 0, %s23
      %s37 = sphi 0, %s39
      %s40 = sphi 0, %s37
      %s41 = sphi 0, %s40
      %s57 = sphi 0, %s41
      %s63 = sphi 0, %s65
      %s66 = sphi 0, %s63
      %s67 = sphi 0, %s66
      %s83 = sphi 0, %s67
    $region4: #{tpu_custom_call.1} parent=1 // loop_header_branch
      %16 = sbr.rel (%p14) target = $region8
    $region5: #{tpu_custom_call.1} parent=1 // loop_body
      %s18 = ssub.s32 %s13, 1
      %s19 = ssub.s32 %s13, 2
      %s26 = sadd.s32 1, %s21
      %p27 = scmp.ge.s32.totalorder %s26, 1
      %s28 = scalar_select %p27, 0, %s26
      %s29 = sadd.s32 1, %s20
      %s30 = scalar_select %p27, %s29, %s20
      %p31 = scmp.ge.s32.totalorder %s30, 2
      %s32 = scalar_select %p31, 0, %s30
      %s33 = sadd.s32 %s20, %s21
      %s34 = sadd.s32 %s32, %s28
      %s35 = ssub.s32 %s33, %s34
      %p36 = scmp.eq.s32.totalorder %s35, 0
      %s38 = sadd.s32 %s37, 1
      %s39 = scalar_select %p36, %s37, %s38
      %p42 = pneg %p36
      %p43 = scmp.eq.s32.totalorder %s13, 1
      %p44 = por %p42, %p43
      %p45 = scmp.ne.s32.totalorder %s37, %s40
      %p46 = scmp.eq.s32.totalorder %s13, 0
      %p47 = por %p45, %p46
      %p48 = scmp.ne.s32.totalorder %s37, %s40
      %p49 = scmp.eq.s32.totalorder %s18, 1
      %p50 = por %p48, %p49
      %p51 = scmp.ne.s32.totalorder %s40, %s41
      %p52 = scmp.eq.s32.totalorder %s18, 0
      %p53 = por %p51, %p52
      %p54 = scmp.ne.s32.totalorder %s40, %s41
      %p55 = scmp.eq.s32.totalorder %s19, 1
      %p56 = por %p54, %p55
      %p58 = scmp.ne.s32.totalorder %s41, %s57
      %p59 = scmp.eq.s32.totalorder %s19, 0
      %p60 = por %p58, %p59
      %s61 = ssub.s32 %s20, %s32
      %p62 = scmp.eq.s32.totalorder %s61, 0
      %s64 = sadd.s32 %s63, 1
      %s65 = scalar_select %p62, %s63, %s64
      %p68 = pneg %p62
      %p69 = scmp.eq.s32.totalorder %s13, 1
      %p70 = por %p68, %p69
      %p71 = scmp.ne.s32.totalorder %s63, %s66
      %p72 = scmp.eq.s32.totalorder %s13, 0
      %p73 = por %p71, %p72
      %p74 = scmp.ne.s32.totalorder %s63, %s66
      %p75 = scmp.eq.s32.totalorder %s18, 1
      %p76 = por %p74, %p75
      %p77 = scmp.ne.s32.totalorder %s66, %s67
      %p78 = scmp.eq.s32.totalorder %s18, 0
      %p79 = por %p77, %p78
      %p80 = scmp.ne.s32.totalorder %s66, %s67
      %p81 = scmp.eq.s32.totalorder %s19, 1
      %p82 = por %p80, %p81
      %p84 = scmp.ne.s32.totalorder %s67, %s83
      %p85 = scmp.eq.s32.totalorder %s19, 0
      %p86 = por %p84, %p85
      %p87 = scmp.le.s32.totalorder 1, %s13
      %p88 = scmp.lt.s32.totalorder %s13, 3
      %p89 = pnand %p87, %p88
      %p90 = pneg %p89
      // Predicated region
      $region9: #{tpu_custom_call.1} parent=5 // pred_check
        _
      $region10: #{tpu_custom_call.1} parent=5 // pred_check_branch
        %92 = sbr.rel (%p89) target = $region12
      $region11: #{tpu_custom_call.1} parent=5 // pred_region
        %s93 = ssub.s32 %s13, 1
      $region12: #{tpu_custom_call.1} parent=5 // pred_fallthru
        _
      %p94 = scmp.lt.s32.totalorder %s13, 2
      // Predicated region
      $region13: #{tpu_custom_call.1} parent=5 // pred_check
        %p95 = pneg %p94
      $region14: #{tpu_custom_call.1} parent=5 // pred_check_branch
        %97 = sbr.rel (%p95) target = $region16
      $region15: #{tpu_custom_call.1} parent=5 // pred_region
        // Predicated region
        $region17: #{tpu_custom_call.1} parent=15 // pred_check
          %p98 = pneg %p47
        $region18: #{tpu_custom_call.1} parent=15 // pred_check_branch
          %100 = sbr.rel (%p98) target = $region20
        $region19: #{tpu_custom_call.1} parent=15 // pred_region
          %s101 = sand.u32 %s37, 1
          %s102 = scalar_lea.sflag [#allocation3], %s101
          %s103 = sand.u32 %s37, 1
          %s104 = smul.addr %s103, 8
          %s105 = scalar_lea.vmem [#allocation2], %s104
          %s106 = sadd.s32 %s20, %s21
          %s108 = ssub.s32 128, 128
          %109 = vsyncadd %s102, %s108
          %s110 = smul.addr %s106, 128
          %s111 = scalar_lea.hbm %s0, %s110
          %s113 = sshll.u32 %s105, 4
          %s114 = int_to_ptr.vmem [resolvable:$true] %s113
          %116 = dma.hbm_to_vmem [thread:$0]  %s111, 128, %s114, %s102
        $region20: #{tpu_custom_call.1} parent=15 // pred_fallthru
          _
      $region16: #{tpu_custom_call.1} parent=5 // pred_fallthru
        _
      %p117 = scmp.le.s32.totalorder 1, %s13
      %p118 = scmp.lt.s32.totalorder %s13, 3
      %p119 = pnand %p117, %p118
      %p120 = pneg %p119
      // Predicated region
      $region21: #{tpu_custom_call.1} parent=5 // pred_check
        _
      $region22: #{tpu_custom_call.1} parent=5 // pred_check_branch
        %122 = sbr.rel (%p119) target = $region24
      $region23: #{tpu_custom_call.1} parent=5 // pred_region
        %s123 = ssub.s32 %s13, 1
        %s124 = sand.u32 %s40, 1
        %s125 = scalar_lea.sflag [#allocation3], %s124
        %s126 = sand.u32 %s40, 1
        %s127 = smul.addr %s126, 8
        %s128 = scalar_lea.vmem [#allocation2], %s127
        // Predicated region
        $region25: #{tpu_custom_call.1} parent=23 // pred_check
          %p129 = pneg %p53
        $region26: #{tpu_custom_call.1} parent=23 // pred_check_branch
          %131 = sbr.rel (%p129) target = $region28
        $region27: #{tpu_custom_call.1} parent=23 // pred_region
          %132 = dma.done %s125, 128
        $region28: #{tpu_custom_call.1} parent=23 // pred_fallthru
          _
        %s133 = sand.u32 %s40, 1
        %s134 = scalar_lea.sflag [#allocation3], %s133
        %s135 = sand.u32 %s40, 1
        %s136 = smul.addr %s135, 8
        %s137 = scalar_lea.vmem [#allocation2], %s136
        %p138 = pneg %p53
        %p139 = pneg %p50
        %p140 = pneg %p79
        %p141 = pneg %p76
        %s142 = sand.u32 %s66, 1
        %s143 = scalar_lea.sflag [#allocation4], %s142
        %s144 = sand.u32 %s66, 1
        %s145 = smul.addr %s144, 8
        %s146 = scalar_lea.vmem [#allocation5], %s145
        %s147 = sadd.s32 %s22, %s23
        %p148 = scmp.eq.s32.totalorder %s23, 0
        // Predicated region
        $region29: #{tpu_custom_call.1} parent=23 // pred_check
          %p149 = pneg %p148
        $region30: #{tpu_custom_call.1} parent=23 // pred_check_branch
          %151 = sbr.rel (%p149) target = $region32
        $region31: #{tpu_custom_call.1} parent=23 // pred_region
          %vm152 = vcmask 64512
          %153 = vst.msk [vmem:[%s146] sm:$0xff] %vm152, 0.0
        $region32: #{tpu_custom_call.1} parent=23 // pred_fallthru
          _
        %v154 = vld [vmem:[%s128] sm:$0xff]
        %v155 = vld [vmem:[%s146] sm:$0xff]
        %156 = vmatprep.subr.mxu0 0.0
        %157 = vmatpush1.xpose.msra.mxu0 %v154
        %158 = vmatprep.subr.mxu0 0.0
        %159 = vmatpush1.xpose.msra.mxu0 0.0
        %160 = vmatprep.subr.mxu0 0.0
        %161 = vmatpush1.xpose.msra.mxu0 0.0
        %162 = vmatprep.subr.mxu0 0.0
        %163 = vmatpush1.xpose.msra.mxu0 0.0
        %164 = vmatprep.subr.mxu0 0.0
        %165 = vmatpush1.xpose.msra.mxu0 0.0
        %166 = vmatprep.subr.mxu0 0.0
        %167 = vmatpush1.xpose.msra.mxu0 0.0
        %168 = vmatprep.subr.mxu0 0.0
        %169 = vmatpush1.xpose.msra.mxu0 0.0
        %170 = vmatprep.subr.mxu0 0.0
        %171 = vmatpush1.xpose.msra.mxu0 0.0
        %172 = vmatprep.subr.mxu0 0.0
        %173 = vmatpush1.xpose.msra.mxu0 0.0
        %174 = vmatprep.subr.mxu0 0.0
        %175 = vmatpush1.xpose.msra.mxu0 0.0
        %176 = vmatprep.subr.mxu0 0.0
        %177 = vmatpush1.xpose.msra.mxu0 0.0
        %178 = vmatprep.subr.mxu0 0.0
        %179 = vmatpush1.xpose.msra.mxu0 0.0
        %180 = vmatprep.subr.mxu0 0.0
        %181 = vmatpush1.xpose.msra.mxu0 0.0
        %182 = vmatprep.subr.mxu0 0.0
        %183 = vmatpush1.xpose.msra.mxu0 0.0
        %184 = vmatprep.subr.mxu0 0.0
        %185 = vmatpush1.xpose.msra.mxu0 0.0
        %186 = vmatprep.subr.mxu0 0.0
        %187 = vmatpush1.xpose.msra.mxu0 0.0
        %188 = vmatprep.subr.mxu0 0.0
        %189 = vmatpush1.xpose.msra.mxu0 0.0
        %190 = vmatprep.subr.mxu0 0.0
        %191 = vmatpush1.xpose.msra.mxu0 0.0
        %192 = vmatprep.subr.mxu0 0.0
        %193 = vmatpush1.xpose.msra.mxu0 0.0
        %194 = vmatprep.subr.mxu0 0.0
        %195 = vmatpush1.xpose.msra.mxu0 0.0
        %196 = vmatprep.subr.mxu0 0.0
        %197 = vmatpush1.xpose.msra.mxu0 0.0
        %198 = vmatprep.subr.mxu0 0.0
        %199 = vmatpush1.xpose.msra.mxu0 0.0
        %200 = vmatprep.subr.mxu0 0.0
        %201 = vmatpush1.xpose.msra.mxu0 0.0
        %202 = vmatprep.subr.mxu0 0.0
        %203 = vmatpush1.xpose.msra.mxu0 0.0
        %204 = vmatprep.subr.mxu0 0.0
        %205 = vmatpush1.xpose.msra.mxu0 0.0
        %206 = vmatprep.subr.mxu0 0.0
        %207 = vmatpush1.xpose.msra.mxu0 0.0
        %208 = vmatprep.subr.mxu0 0.0
        %209 = vmatpush1.xpose.msra.mxu0 0.0
        %210 = vmatprep.subr.mxu0 0.0
        %211 = vmatpush1.xpose.msra.mxu0 0.0
        %212 = vmatprep.subr.mxu0 0.0
        %213 = vmatpush1.xpose.msra.mxu0 0.0
        %214 = vmatprep.subr.mxu0 0.0
        %215 = vmatpush1.xpose.msra.mxu0 0.0
        %216 = vmatprep.subr.mxu0 0.0
        %217 = vmatpush1.xpose.msra.mxu0 0.0
        %218 = vmatprep.subr.mxu0 0.0
        %219 = vmatpush1.xpose.msra.mxu0 0.0
        %220 = vmatprep.mubr.f32.mxu0 0.0
        %221 = vmatmul.mubr.f32.gmra.mrb[0].mxu0 %v154
        %v222 = vpop.f32.mrb[0].mxu0
        %v223 = vadd.f32 0.0, %v222
        %v224 = vpop.f32.mrb[0].mxu0
        %225 = vdwg.mxu0
        %v226 = vadd.f32 %v155, %v223
        %vm227 = vcmask 64512
        %228 = vst.msk [vmem:[%s146] sm:$0xff] %vm227, %v226
        // Predicated region
        $region33: #{tpu_custom_call.1} parent=23 // pred_check
          %p229 = pneg %p148
        $region34: #{tpu_custom_call.1} parent=23 // pred_check_branch
          %231 = sbr.rel (%p229) target = $region36
        $region35: #{tpu_custom_call.1} parent=23 // pred_region
          %v232 = vld [vmem:[%s146] sm:$0xff]
          %v233 = vmul.f32 %v232, 0.00048828125
          %234 = vst.msk [vmem:[%s146] sm:$0xff] %vm227, %v233
        $region36: #{tpu_custom_call.1} parent=23 // pred_fallthru
          _
        %s235 = sand.u32 %s66, 1
        %s236 = scalar_lea.sflag [#allocation4], %s235
        %s237 = sand.u32 %s66, 1
        %s238 = smul.addr %s237, 8
        %s239 = scalar_lea.vmem [#allocation5], %s238
        // Predicated region
        $region37: #{tpu_custom_call.1} parent=23 // pred_check
          %p240 = pneg %p76
        $region38: #{tpu_custom_call.1} parent=23 // pred_check_branch
          %242 = sbr.rel (%p240) target = $region40
        $region39: #{tpu_custom_call.1} parent=23 // pred_region
          %s244 = ssub.s32 128, 128
          %245 = vsyncadd %s236, %s244
          %s246 = smul.addr %s22, 128
          %s247 = scalar_lea.hbm %s1, %s246
          %s249 = sshll.u32 %s239, 4
          %s250 = int_to_ptr.vmem [resolvable:$true] %s249
          %252 = dma.vmem_to_hbm [thread:$0]  %s250, 128, %s247, %s236
        $region40: #{tpu_custom_call.1} parent=23 // pred_fallthru
          _
      $region24: #{tpu_custom_call.1} parent=5 // pred_fallthru
        _
      %p253 = scmp.le.s32.totalorder 2, %s13
      // Predicated region
      $region41: #{tpu_custom_call.1} parent=5 // pred_check
        %p254 = pneg %p253
      $region42: #{tpu_custom_call.1} parent=5 // pred_check_branch
        %256 = sbr.rel (%p254) target = $region44
      $region43: #{tpu_custom_call.1} parent=5 // pred_region
        %s257 = ssub.s32 %s13, 2
        // Predicated region
        $region45: #{tpu_custom_call.1} parent=43 // pred_check
          %p258 = pneg %p82
        $region46: #{tpu_custom_call.1} parent=43 // pred_check_branch
          %260 = sbr.rel (%p258) target = $region48
        $region47: #{tpu_custom_call.1} parent=43 // pred_region
          %s261 = sand.u32 %s67, 1
          %s262 = scalar_lea.sflag [#allocation4], %s261
          %s263 = sand.u32 %s67, 1
          %s264 = smul.addr %s263, 8
          %s265 = scalar_lea.vmem [#allocation5], %s264
          %266 = dma.done %s262, 128
        $region48: #{tpu_custom_call.1} parent=43 // pred_fallthru
          _
      $region44: #{tpu_custom_call.1} parent=5 // pred_fallthru
        _
    $region6: #{tpu_custom_call.1} parent=1 // loop_footer
      %s17 = sadd.s32 1, %s13
    $region7: #{tpu_custom_call.1} parent=1 // loop_footer_branch
      %12 = sbr.rel target = $region3
    $region8: #{tpu_custom_call.1} parent=1 // loop_exit
      _
    %267 = vsyncpa [#allocation3], 1
    %s268 = scalar_lea.sflag [#allocation3], 1
    %269 = vsyncpa %s268, 1
    %270 = vsyncpa [#allocation4], 1
    %s271 = scalar_lea.sflag [#allocation4], 1
    %272 = vsyncpa %s271, 1

</llo_original>
